<compile_context>
chip_gen: v6e
topology: v6e:2x2x1
jax: 0.10.0
libtpu: 0.0.40
codegen_flags: <defaults>
</compile_context>

<pallas_src>
import functools

import jax
import jax.numpy as jnp
from jax.experimental import pallas as pl
from jax.experimental.pallas import tpu as pltpu

LANE = 128
SUB = 8


def _round_up(x, m):
    return (x + m - 1) // m * m


# ------------------------------------------------------------------ kernel
def _dsconv_kernel(x_ref, dw_ref, b1_ref, wpw_ref, b2_ref, o_ref, *, cin):
    """One fused batch-block per grid step.

    x_ref  : (Rblk, WCp) f32   packed activations; each image occupies Hp rows with
                               zero halo rows top/bottom; lanes are (w, c) channel-minor
                               with zero padding up to WCp.
    dw_ref : (9, WCp)    f32   folded depthwise taps (k = kh*3 + kw), tiled over W,
                               W-edge taps zeroed at pack time.
    b1_ref : (1, WCp)    f32   folded BN1 bias.
    wpw_ref: (WCp, WCo)  bf16  block-diagonal folded pointwise weight.
    b2_ref : (1, WCo)    f32   folded BN2 bias.
    o_ref  : (Rblk, WCo) f32   lane-dense output (halo rows hold garbage, discarded).
    """
    x = x_ref[...]                              # (Rblk, WCp)
    rows, wcp = x.shape
    dw = dw_ref[...]                            # single hoisted load of all 9 taps

    # ---- 3x3 depthwise conv (stride 1, pad 1): 9 roll + multiply-adds, no masks ----
    acc = jnp.zeros((rows, wcp), jnp.float32)
    for kh in range(3):
        for kw in range(3):
            dh, dwc = kh - 1, kw - 1
            s = x
            if dwc != 0:
                # Shift whole (w, c) lane groups; any wrap-around only reaches lanes
                # whose tap weight was zeroed at pack time (image W edges / pad lanes).
                s = pltpu.roll(s, shift=(-dwc * cin) % wcp, axis=1)
            if dh != 0:
                # Every image carries its own zero halo rows, so the sublane wrap only
                # touches halo rows (never a valid output row).
                s = pltpu.roll(s, shift=(-dh) % rows, axis=0)
            k = kh * 3 + kw
            acc = acc + s * dw[k:k + 1, :]

    # ---- folded BN1 + ReLU6 ----
    t = jnp.clip(acc + b1_ref[...], 0.0, 6.0)

    # ---- 1x1 pointwise conv + folded BN2 + ReLU6: one lane-dense MXU matmul ----
    y = jnp.dot(t.astype(jnp.bfloat16), wpw_ref[...],
                preferred_element_type=jnp.float32)
    o_ref[...] = jnp.clip(y + b2_ref[...], 0.0, 6.0)


# ------------------------------------------------------------------ one-time packing
def pack_weights(folded, W):
    """One-time packing of BN-folded weights into the kernel's lane-dense layout."""
    dw_hwc, b1, pw, b2 = folded
    cin = dw_hwc.shape[-1]
    cout = pw.shape[1]
    lanes_in, lanes_out = W * cin, W * cout
    wcp = _round_up(lanes_in, LANE)
    wco = _round_up(lanes_out, LANE)

    # Depthwise taps tiled over W.  Fold the conv's W zero-padding into the weights:
    # kw=0 tap zeroed for column 0, kw=2 tap zeroed for column W-1, so lane-roll
    # wrap-around in the kernel always multiplies by 0.
    taps = jnp.tile(dw_hwc.reshape(9, cin), (1, W))                  # (9, W*cin)
    tap_kw = (jnp.arange(9) % 3)[:, None]
    col = (jnp.arange(lanes_in) // cin)[None, :]
    edge = ((tap_kw == 0) & (col == 0)) | ((tap_kw == 2) & (col == W - 1))
    taps = jnp.where(edge, 0.0, taps)
    dw_pack = jnp.pad(taps, ((0, 0), (0, wcp - lanes_in)))

    b1_pack = jnp.pad(jnp.tile(b1, W), (0, wcp - lanes_in)).reshape(1, wcp)

    # Block-diagonal pointwise weight: [w*Cin+ci, w*Cout+co] = pw[ci, co].
    # TODO(synk): at production W*C use a dense channels-minor (Cin, Cout) matmul.
    wpw = jnp.kron(jnp.eye(W, dtype=pw.dtype), pw)                   # (W*Cin, W*Cout)
    wpw_pack = jnp.pad(
        wpw, ((0, wcp - lanes_in), (0, wco - lanes_out))).astype(jnp.bfloat16)

    b2_pack = jnp.pad(jnp.tile(b2, W), (0, wco - lanes_out)).reshape(1, wco)

    meta = dict(cin=cin, cout=cout, W=W, wcp=wcp, wco=wco)
    return (dw_pack, b1_pack, wpw_pack, b2_pack), meta


def pack_input(x_nchw, wcp):
    """Layout conversion NCHW -> (B*Hp, wcp) lane-dense slab with zero halo rows.
    Do this once / upstream: it is a full HBM round trip of the activation."""
    B, cin, H, W = x_nchw.shape
    hp = _round_up(H + 2, SUB)                  # 1 zero row on top, >=1 below
    x = jnp.transpose(x_nchw, (0, 2, 3, 1)).reshape(B, H, W * cin)
    x = jnp.pad(x, ((0, 0), (1, hp - H - 1), (0, wcp - W * cin)))
    return x.reshape(B * hp, wcp), hp


def unpack_output(y_pack, *, B, H, W, cout, hp):
    y = y_pack.reshape(B, hp, -1)[:, 1:H + 1, :W * cout]
    return jnp.transpose(y.reshape(B, H, W, cout), (0, 3, 1, 2))     # NCHW


# ------------------------------------------------------------------ pallas entry
def _choose_imgs_per_block(B, hp, target_rows=512):
    """Largest divisor of B whose row block stays near ~512 rows (tile-sweep sweet
    spot); for tiny B this fuses the whole batch into a single grid step."""
    max_imgs = max(1, target_rows // hp)
    best = 1
    for d in range(1, B + 1):
        if B % d == 0 and d <= max_imgs:
            best = d
    return best


@functools.partial(jax.jit, static_argnames=("cin", "hp", "imgs_per_block"))
def dsconv_forward_packed(x_pack, dw_pack, b1_pack, wpw_pack, b2_pack, *,
                          cin, hp, imgs_per_block):
    rows, wcp = x_pack.shape
    wco = wpw_pack.shape[1]
    rblk = imgs_per_block * hp
    assert rows % rblk == 0
    nblk = rows // rblk
    kernel = functools.partial(_dsconv_kernel, cin=cin)
    return pl.pallas_call(
        kernel,
        out_shape=jax.ShapeDtypeStruct((rows, wco), jnp.float32),
        grid_spec=pltpu.PrefetchScalarGridSpec(
            num_scalar_prefetch=0,
            grid=(nblk,),
            in_specs=[
                pl.BlockSpec((rblk, wcp), lambda i: (i, 0)),
                # Weight operands: constant index maps -> resident across grid steps.
                pl.BlockSpec((9, wcp), lambda i: (0, 0)),
                pl.BlockSpec((1, wcp), lambda i: (0, 0)),
                pl.BlockSpec((wcp, wco), lambda i: (0, 0)),
                pl.BlockSpec((1, wco), lambda i: (0, 0)),
            ],
            out_specs=pl.BlockSpec((rblk, wco), lambda i: (i, 0)),
        ),
        compiler_params=pltpu.CompilerParams(
            dimension_semantics=("parallel",),   # batch blocks across TCs (v7x)
            vmem_limit_bytes=32 * 1024 * 1024),
    )(x_pack, dw_pack, b1_pack, wpw_pack, b2_pack)


def depthwise_separable_conv(x_nchw, packed, meta, *, stride=1):
    """NCHW -> NCHW convenience wrapper (activation layout conversion not amortized
    here; in a real pipeline keep activations in the packed layout between layers)."""
    if stride != 1:
        # TODO(synk): stride>1 needs an even/odd lane-phase split of the packed W axis.
        raise NotImplementedError("only stride=1 (module default) is implemented")
    B, cin, H, W = x_nchw.shape
    assert cin == meta["cin"] and W == meta["W"]
    x_pack, hp = pack_input(x_nchw, meta["wcp"])
    imgs = _choose_imgs_per_block(B, hp)
    y_pack = dsconv_forward_packed(x_pack, *packed, cin=cin, hp=hp,
                                   imgs_per_block=imgs)
    return unpack_output(y_pack, B=B, H=H, W=W, cout=meta["cout"], hp=hp)


# ------------------------------------------------------------------ params / reference
def make_raw_params(key, cin, cout):
    """Deterministic synthetic conv weights + BatchNorm running stats."""
    ks = jax.random.split(key, 10)
    dw = 0.4 * jax.random.normal(ks[0], (cin, 1, 3, 3), jnp.float32)     # torch depthwise
    pw = 0.4 * jax.random.normal(ks[1], (cout, cin, 1, 1), jnp.float32)  # torch pointwise

    def bn(kg, kb, km, kv, c):
        gamma = 1.0 + 0.1 * jax.random.normal(kg, (c,), jnp.float32)
        beta = 0.1 * jax.random.normal(kb, (c,), jnp.float32)
        mean = 0.1 * jax.random.normal(km, (c,), jnp.float32)
        var = jax.nn.softplus(jax.random.normal(kv, (c,), jnp.float32)) + 0.5
        return gamma, beta, mean, var

    return dw, pw, bn(ks[2], ks[3], ks[4], ks[5], cin), bn(ks[6], ks[7], ks[8], ks[9], cout)


def fold_bn(raw, eps=1e-5):
    """Fold inference-mode BatchNorm into the conv weights."""
    dw, pw, (g1, be1, m1, v1), (g2, be2, m2, v2) = raw
    s1 = g1 / jnp.sqrt(v1 + eps)
    s2 = g2 / jnp.sqrt(v2 + eps)
    dw_hwc = jnp.transpose(dw[:, 0], (1, 2, 0)) * s1[None, None, :]      # (3, 3, Cin)
    pw_cico = jnp.transpose(pw[:, :, 0, 0]) * s2[None, :]                # (Cin, Cout)
    return dw_hwc, be1 - m1 * s1, pw_cico, be2 - m2 * s2


def reference_forward(x_nchw, folded):
    """Plain-JAX reference (depthwise in f32; pointwise operands cast to bf16 with
    f32 accumulation to match the kernel's native-MXU precision)."""
    dw_hwc, b1, pw, b2 = folded
    x = jnp.transpose(x_nchw, (0, 2, 3, 1))                              # NHWC
    B, H, W, cin = x.shape
    xp = jnp.pad(x, ((0, 0), (1, 1), (1, 1), (0, 0)))
    t = jnp.zeros((B, H, W, cin), jnp.float32)
    for kh in range(3):
        for kw in range(3):
            t = t + xp[:, kh:kh + H, kw:kw + W, :] * dw_hwc[kh, kw]
    t = jnp.clip(t + b1, 0.0, 6.0)
    y = jnp.einsum('bhwc,co->bhwo', t.astype(jnp.bfloat16), pw.astype(jnp.bfloat16),
                   preferred_element_type=jnp.float32)
    y = jnp.clip(y + b2, 0.0, 6.0)
    return jnp.transpose(y, (0, 3, 1, 2))                                # NCHW


if __name__ == "__main__":
    key = jax.random.PRNGKey(0)
    k_x, k_p = jax.random.split(key)

    B, C_in, H, W = 2, 4, 16, 16
    C_out = 8                                    # W*C_out = 128 -> lane-dense output

    x_nchw = jax.random.normal(k_x, (B, C_in, H, W), jnp.float32)
    folded = fold_bn(make_raw_params(k_p, C_in, C_out))

    # One-time weight packing, kept out of the per-call path.
    packed, meta = pack_weights(folded, W)
    packed = tuple(jax.block_until_ready(p) for p in packed)

    out = depthwise_separable_conv(x_nchw, packed, meta, stride=1)
    out = jax.block_until_ready(out)

    ref = reference_forward(x_nchw, folded)
    assert out.shape == ref.shape == (B, C_out, H, W)
    err = float(jnp.max(jnp.abs(out - ref)))
    assert jnp.allclose(out, ref, atol=1e-3, rtol=1e-3), f"mismatch vs reference: {err}"

    print("KERNEL_OK")
</pallas_src>

<mosaic_0001>
module attributes {stable_mosaic.version = 11 : i64} {
  func.func @_dsconv_kernel(%arg0: i32, %arg1: memref<48x128xf32, #tpu.memory_space<vmem>>, %arg2: memref<9x128xf32, #tpu.memory_space<vmem>>, %arg3: memref<1x128xf32, #tpu.memory_space<vmem>>, %arg4: memref<128x128xbf16, #tpu.memory_space<vmem>>, %arg5: memref<1x128xf32, #tpu.memory_space<vmem>>, %arg6: memref<48x128xf32, #tpu.memory_space<vmem>>) attributes {dimension_semantics = [#tpu.dimension_semantics<parallel>], iteration_bounds = array<i64: 1>, scalar_prefetch = 0 : i64, scratch_operands = 0 : i64, tpu.core_type = #tpu.core_type<tc>, window_params = [{transform_indices = @transform_0, window_bounds = array<i64: 48, 128>}, {pipeline_mode = #tpu.pipeline_mode<synchronous>, transform_indices = @transform_1, window_bounds = array<i64: 9, 128>}, {pipeline_mode = #tpu.pipeline_mode<synchronous>, transform_indices = @transform_2, window_bounds = array<i64: 1, 128>}, {pipeline_mode = #tpu.pipeline_mode<synchronous>, transform_indices = @transform_3, window_bounds = array<i64: 128, 128>}, {pipeline_mode = #tpu.pipeline_mode<synchronous>, transform_indices = @transform_4, window_bounds = array<i64: 1, 128>}, {transform_indices = @transform_5, window_bounds = array<i64: 48, 128>}]} {
    %c0 = arith.constant 0 : index
    %c0_0 = arith.constant 0 : index
    %0 = vector.load %arg1[%c0, %c0_0] : memref<48x128xf32, #tpu.memory_space<vmem>>, vector<48x128xf32>
    %c0_1 = arith.constant 0 : index
    %c0_2 = arith.constant 0 : index
    %1 = vector.load %arg2[%c0_1, %c0_2] : memref<9x128xf32, #tpu.memory_space<vmem>>, vector<9x128xf32>
    %cst = arith.constant 0.000000e+00 : f32
    %2 = vector.broadcast %cst : f32 to vector<48x128xf32>
    %c4_i32 = arith.constant 4 : i32
    %3 = tpu.dynamic_rotate %0 by %c4_i32 dim 1 : vector<48x128xf32>, i32 -> vector<48x128xf32>
    %c1_i32 = arith.constant 1 : i32
    %4 = tpu.dynamic_rotate %3 by %c1_i32 dim 0 : vector<48x128xf32>, i32 -> vector<48x128xf32>
    %5 = vector.extract_strided_slice %1 {offsets = [0, 0], sizes = [1, 128], strides = [1, 1]} : vector<9x128xf32> to vector<1x128xf32>
    %6 = vector.broadcast %5 : vector<1x128xf32> to vector<48x128xf32>
    %7 = arith.mulf %4, %6 : vector<48x128xf32>
    %8 = arith.addf %2, %7 : vector<48x128xf32>
    %c1_i32_3 = arith.constant 1 : i32
    %9 = tpu.dynamic_rotate %0 by %c1_i32_3 dim 0 : vector<48x128xf32>, i32 -> vector<48x128xf32>
    %10 = vector.extract_strided_slice %1 {offsets = [1, 0], sizes = [1, 128], strides = [1, 1]} : vector<9x128xf32> to vector<1x128xf32>
    %11 = vector.broadcast %10 : vector<1x128xf32> to vector<48x128xf32>
    %12 = arith.mulf %9, %11 : vector<48x128xf32>
    %13 = arith.addf %8, %12 : vector<48x128xf32>
    %c124_i32 = arith.constant 124 : i32
    %14 = tpu.dynamic_rotate %0 by %c124_i32 dim 1 : vector<48x128xf32>, i32 -> vector<48x128xf32>
    %c1_i32_4 = arith.constant 1 : i32
    %15 = tpu.dynamic_rotate %14 by %c1_i32_4 dim 0 : vector<48x128xf32>, i32 -> vector<48x128xf32>
    %16 = vector.extract_strided_slice %1 {offsets = [2, 0], sizes = [1, 128], strides = [1, 1]} : vector<9x128xf32> to vector<1x128xf32>
    %17 = vector.broadcast %16 : vector<1x128xf32> to vector<48x128xf32>
    %18 = arith.mulf %15, %17 : vector<48x128xf32>
    %19 = arith.addf %13, %18 : vector<48x128xf32>
    %c4_i32_5 = arith.constant 4 : i32
    %20 = tpu.dynamic_rotate %0 by %c4_i32_5 dim 1 : vector<48x128xf32>, i32 -> vector<48x128xf32>
    %21 = vector.extract_strided_slice %1 {offsets = [3, 0], sizes = [1, 128], strides = [1, 1]} : vector<9x128xf32> to vector<1x128xf32>
    %22 = vector.broadcast %21 : vector<1x128xf32> to vector<48x128xf32>
    %23 = arith.mulf %20, %22 : vector<48x128xf32>
    %24 = arith.addf %19, %23 : vector<48x128xf32>
    %25 = vector.extract_strided_slice %1 {offsets = [4, 0], sizes = [1, 128], strides = [1, 1]} : vector<9x128xf32> to vector<1x128xf32>
    %26 = vector.broadcast %25 : vector<1x128xf32> to vector<48x128xf32>
    %27 = arith.mulf %0, %26 : vector<48x128xf32>
    %28 = arith.addf %24, %27 : vector<48x128xf32>
    %c124_i32_6 = arith.constant 124 : i32
    %29 = tpu.dynamic_rotate %0 by %c124_i32_6 dim 1 : vector<48x128xf32>, i32 -> vector<48x128xf32>
    %30 = vector.extract_strided_slice %1 {offsets = [5, 0], sizes = [1, 128], strides = [1, 1]} : vector<9x128xf32> to vector<1x128xf32>
    %31 = vector.broadcast %30 : vector<1x128xf32> to vector<48x128xf32>
    %32 = arith.mulf %29, %31 : vector<48x128xf32>
    %33 = arith.addf %28, %32 : vector<48x128xf32>
    %c4_i32_7 = arith.constant 4 : i32
    %34 = tpu.dynamic_rotate %0 by %c4_i32_7 dim 1 : vector<48x128xf32>, i32 -> vector<48x128xf32>
    %c47_i32 = arith.constant 47 : i32
    %35 = tpu.dynamic_rotate %34 by %c47_i32 dim 0 : vector<48x128xf32>, i32 -> vector<48x128xf32>
    %36 = vector.extract_strided_slice %1 {offsets = [6, 0], sizes = [1, 128], strides = [1, 1]} : vector<9x128xf32> to vector<1x128xf32>
    %37 = vector.broadcast %36 : vector<1x128xf32> to vector<48x128xf32>
    %38 = arith.mulf %35, %37 : vector<48x128xf32>
    %39 = arith.addf %33, %38 : vector<48x128xf32>
    %c47_i32_8 = arith.constant 47 : i32
    %40 = tpu.dynamic_rotate %0 by %c47_i32_8 dim 0 : vector<48x128xf32>, i32 -> vector<48x128xf32>
    %41 = vector.extract_strided_slice %1 {offsets = [7, 0], sizes = [1, 128], strides = [1, 1]} : vector<9x128xf32> to vector<1x128xf32>
    %42 = vector.broadcast %41 : vector<1x128xf32> to vector<48x128xf32>
    %43 = arith.mulf %40, %42 : vector<48x128xf32>
    %44 = arith.addf %39, %43 : vector<48x128xf32>
    %c124_i32_9 = arith.constant 124 : i32
    %45 = tpu.dynamic_rotate %0 by %c124_i32_9 dim 1 : vector<48x128xf32>, i32 -> vector<48x128xf32>
    %c47_i32_10 = arith.constant 47 : i32
    %46 = tpu.dynamic_rotate %45 by %c47_i32_10 dim 0 : vector<48x128xf32>, i32 -> vector<48x128xf32>
    %47 = vector.extract_strided_slice %1 {offsets = [8, 0], sizes = [1, 128], strides = [1, 1]} : vector<9x128xf32> to vector<1x128xf32>
    %48 = vector.broadcast %47 : vector<1x128xf32> to vector<48x128xf32>
    %49 = arith.mulf %46, %48 : vector<48x128xf32>
    %50 = arith.addf %44, %49 : vector<48x128xf32>
    %c0_11 = arith.constant 0 : index
    %c0_12 = arith.constant 0 : index
    %51 = vector.load %arg3[%c0_11, %c0_12] : memref<1x128xf32, #tpu.memory_space<vmem>>, vector<1x128xf32>
    %52 = vector.broadcast %51 : vector<1x128xf32> to vector<48x128xf32>
    %53 = arith.addf %50, %52 : vector<48x128xf32>
    %cst_13 = arith.constant 0.000000e+00 : f32
    %cst_14 = arith.constant 6.000000e+00 : f32
    %54 = vector.broadcast %cst_13 : f32 to vector<48x128xf32>
    %55 = arith.maximumf %54, %53 : vector<48x128xf32>
    %56 = vector.broadcast %cst_14 : f32 to vector<48x128xf32>
    %57 = arith.minimumf %56, %55 : vector<48x128xf32>
    %58 = arith.truncf %57 : vector<48x128xf32> to vector<48x128xbf16>
    %c0_15 = arith.constant 0 : index
    %c0_16 = arith.constant 0 : index
    %59 = vector.load %arg4[%c0_15, %c0_16] : memref<128x128xbf16, #tpu.memory_space<vmem>>, vector<128x128xbf16>
    %cst_17 = arith.constant dense<0.000000e+00> : vector<48x128xf32>
    %60 = tpu.matmul %58, %59, %cst_17 {dimension_numbers = #tpu.dot_dimension_numbers<[1], [0], [0], [1], [0, 0, 1, 1], [], []>} : vector<48x128xbf16>, vector<128x128xbf16>, vector<48x128xf32> -> vector<48x128xf32>
    %c0_18 = arith.constant 0 : index
    %c0_19 = arith.constant 0 : index
    %61 = vector.load %arg5[%c0_18, %c0_19] : memref<1x128xf32, #tpu.memory_space<vmem>>, vector<1x128xf32>
    %62 = vector.broadcast %61 : vector<1x128xf32> to vector<48x128xf32>
    %63 = arith.addf %60, %62 : vector<48x128xf32>
    %cst_20 = arith.constant 0.000000e+00 : f32
    %cst_21 = arith.constant 6.000000e+00 : f32
    %64 = vector.broadcast %cst_20 : f32 to vector<48x128xf32>
    %65 = arith.maximumf %64, %63 : vector<48x128xf32>
    %66 = vector.broadcast %cst_21 : f32 to vector<48x128xf32>
    %67 = arith.minimumf %66, %65 : vector<48x128xf32>
    %c0_22 = arith.constant 0 : index
    %c0_23 = arith.constant 0 : index
    %68 = vector.load %arg6[%c0_22, %c0_23] : memref<48x128xf32, #tpu.memory_space<vmem>>, vector<48x128xf32>
    tpu.vector_store %arg6[%c0_22, %c0_23], %67 {strides = array<i32>} : memref<48x128xf32, #tpu.memory_space<vmem>>, vector<48x128xf32>,
    return
  }
  func.func @transform_0(%arg0: i32) -> (i32, i32) {
    %c0_i32 = arith.constant 0 : i32
    %c0_i32_0 = arith.constant 0 : i32
    return %arg0, %c0_i32 : i32, i32
  }
  func.func @transform_1(%arg0: i32) -> (i32, i32) {
    %c0_i32 = arith.constant 0 : i32
    %c0_i32_0 = arith.constant 0 : i32
    %c0_i32_1 = arith.constant 0 : i32
    return %c0_i32, %c0_i32_0 : i32, i32
  }
  func.func @transform_2(%arg0: i32) -> (i32, i32) {
    %c0_i32 = arith.constant 0 : i32
    %c0_i32_0 = arith.constant 0 : i32
    %c0_i32_1 = arith.constant 0 : i32
    return %c0_i32, %c0_i32_0 : i32, i32
  }
  func.func @transform_3(%arg0: i32) -> (i32, i32) {
    %c0_i32 = arith.constant 0 : i32
    %c0_i32_0 = arith.constant 0 : i32
    %c0_i32_1 = arith.constant 0 : i32
    return %c0_i32, %c0_i32_0 : i32, i32
  }
  func.func @transform_4(%arg0: i32) -> (i32, i32) {
    %c0_i32 = arith.constant 0 : i32
    %c0_i32_0 = arith.constant 0 : i32
    %c0_i32_1 = arith.constant 0 : i32
    return %c0_i32, %c0_i32_0 : i32, i32
  }
  func.func @transform_5(%arg0: i32) -> (i32, i32) {
    %c0_i32 = arith.constant 0 : i32
    %c0_i32_0 = arith.constant 0 : i32
    return %arg0, %c0_i32 : i32, i32
  }
}

</mosaic_0001>

<llo_original>
// kernel: dsconv_forward_packed.1
$region0: #{dsconv_forward_packed.1}
  #allocation0 [shape = 'u32[]', space=smem, size = 0x4, offset = 0x4, fixed_abs, tag = 'smem constant byte address 0x4 - core index']
  #allocation1 [shape = 'u32[144,128]{1,0:T(1,128)}', space=vmem, size = 0x12000, scoped, tag = 'internal scratch']
  %s0 = inlined_call_operand.hbm [shape: f32[48,128], index: 0, kind: input, shape index: {}]
  %s1 = inlined_call_operand.hbm [shape: f32[9,128], index: 1, kind: input, shape index: {}]
  %s2 = inlined_call_operand.vmem [shape: f32[1,128], index: 2, kind: input, shape index: {}]
  %s3 = inlined_call_operand.hbm [shape: bf16[128,128], index: 3, kind: input, shape index: {}]
  %s4 = inlined_call_operand.vmem [shape: f32[1,128], index: 4, kind: input, shape index: {}]
  %s5 = inlined_call_operand.hbm [shape: f32[48,128], index: 5, kind: output, shape index: {}]
  %s6 = sld [smem:[#allocation0]]
  $region42: #{dsconv_forward_packed.1} parent=0
    _
  %s8 = ssub.s32 1, %s6
  %s9 = scalar_select 0, %s8, %s6
  $region1: #{dsconv_forward_packed.1} parent=0
    #allocation2 [shape = 'u8[24576]{0}', space=vmem, size = 0x6000, scoped, tag = 'input window, operand 0, single buffered']
    #allocation3 [shape = 's32[1]{0}', space=sflag, size = 0x4, scoped, tag = 'scoped memory for dsconv_forward_packed.1']
    #allocation4 [shape = 's32[1]{0}', space=sflag, size = 0x4, scoped, tag = 'scoped memory for dsconv_forward_packed.1']
    #allocation5 [shape = 'u8[8192]{0}', space=vmem, size = 0x2000, scoped, tag = 'input window, operand 1, single buffered']
    #allocation6 [shape = 's32[1]{0}', space=sflag, size = 0x4, scoped, tag = 'scoped memory for dsconv_forward_packed.1']
    #allocation7 [shape = 'u8[32768]{0}', space=vmem, size = 0x8000, scoped, tag = 'input window, operand 3, single buffered']
    #allocation8 [shape = 'u8[24576]{0}', space=vmem, size = 0x6000, scoped, tag = 'output window, operand 0, single buffered']
    %10 = vsyncpa [#allocation3], 0
    %11 = vsyncpa [#allocation6], 0
    %12 = vsyncpa [#allocation4], 0
    // Predicated region
    $region2: #{dsconv_forward_packed.1} parent=1 // pred_check
      _
    $region3: #{dsconv_forward_packed.1} parent=1 // pred_check_branch
      %14 = sbr.rel (0) target = $region5
    $region4: #{dsconv_forward_packed.1} parent=1 // pred_region
      %s16 = ssub.s32 768, 768
      %17 = vsyncadd [#allocation3], %s16
      %s18 = sshll.u32 [#allocation2], 4
      %s19 = int_to_ptr.vmem [resolvable:$true] %s18
      %24 = dma.hbm_to_vmem [thread:$0]  %s0, 768, %s19, [#allocation3], 128, 128, 8
    $region5: #{dsconv_forward_packed.1} parent=1 // pred_fallthru
      _
    // Predicated region
    $region6: #{dsconv_forward_packed.1} parent=1 // pred_check
      _
    $region7: #{dsconv_forward_packed.1} parent=1 // pred_check_branch
      %26 = sbr.rel (0) target = $region9
    $region8: #{dsconv_forward_packed.1} parent=1 // pred_region
      %s28 = ssub.s32 256, 256
      %29 = vsyncadd [#allocation6], %s28
      %s30 = sshll.u32 [#allocation5], 4
      %s31 = int_to_ptr.vmem [resolvable:$true] %s30
      %36 = dma.hbm_to_vmem [thread:$0]  %s1, 256, %s31, [#allocation6], 128, 128, 8
    $region9: #{dsconv_forward_packed.1} parent=1 // pred_fallthru
      _
    // Predicated region
    $region10: #{dsconv_forward_packed.1} parent=1 // pred_check
      _
    $region11: #{dsconv_forward_packed.1} parent=1 // pred_check_branch
      %38 = sbr.rel (0) target = $region13
    $region12: #{dsconv_forward_packed.1} parent=1 // pred_region
      _
    $region13: #{dsconv_forward_packed.1} parent=1 // pred_fallthru
      _
    // Predicated region
    $region14: #{dsconv_forward_packed.1} parent=1 // pred_check
      _
    $region15: #{dsconv_forward_packed.1} parent=1 // pred_check_branch
      %40 = sbr.rel (0) target = $region17
    $region16: #{dsconv_forward_packed.1} parent=1 // pred_region
      %s42 = ssub.s32 1024, 1024
      %43 = vsyncadd [#allocation6], %s42
      %s44 = sshll.u32 [#allocation7], 4
      %s45 = int_to_ptr.vmem [resolvable:$true] %s44
      %50 = dma.hbm_to_vmem [thread:$0]  %s3, 1024, %s45, [#allocation6], 64, 64, 4
    $region17: #{dsconv_forward_packed.1} parent=1 // pred_fallthru
      _
    // Predicated region
    $region18: #{dsconv_forward_packed.1} parent=1 // pred_check
      _
    $region19: #{dsconv_forward_packed.1} parent=1 // pred_check_branch
      %52 = sbr.rel (0) target = $region21
    $region20: #{dsconv_forward_packed.1} parent=1 // pred_region
      _
    $region21: #{dsconv_forward_packed.1} parent=1 // pred_fallthru
      _
    // Predicated region
    $region22: #{dsconv_forward_packed.1} parent=1 // pred_check
      _
    $region23: #{dsconv_forward_packed.1} parent=1 // pred_check_branch
      %54 = sbr.rel (0) target = $region25
    $region24: #{dsconv_forward_packed.1} parent=1 // pred_region
      %55 = dma.done [#allocation3], 768
    $region25: #{dsconv_forward_packed.1} parent=1 // pred_fallthru
      _
    // Predicated region
    $region26: #{dsconv_forward_packed.1} parent=1 // pred_check
      _
    $region27: #{dsconv_forward_packed.1} parent=1 // pred_check_branch
      %57 = sbr.rel (0) target = $region29
    $region28: #{dsconv_forward_packed.1} parent=1 // pred_region
      %58 = dma.done [#allocation6], 256
    $region29: #{dsconv_forward_packed.1} parent=1 // pred_fallthru
      _
    // Predicated region
    $region30: #{dsconv_forward_packed.1} parent=1 // pred_check
      _
    $region31: #{dsconv_forward_packed.1} parent=1 // pred_check_branch
      %60 = sbr.rel (0) target = $region33
    $region32: #{dsconv_forward_packed.1} parent=1 // pred_region
      %61 = dma.done [#allocation6], 1024
    $region33: #{dsconv_forward_packed.1} parent=1 // pred_fallthru
      _
    %v63 = vld [vmem:[#allocation2] sm:$0xff]
    %v64 = vld [vmem:[#allocation2 + $0x8] sm:$0xff]
    %v65 = vld [vmem:[#allocation2 + $0x10] sm:$0xff]
    %v66 = vld [vmem:[#allocation2 + $0x18] sm:$0xff]
    %v67 = vld [vmem:[#allocation2 + $0x20] sm:$0xff]
    %v68 = vld [vmem:[#allocation2 + $0x28] sm:$0xff]
    %v69 = vld [vmem:[#allocation5] sm:$0xff]
    %v70 = vld [vmem:[#allocation5 + $0x8] sm:$0x1]
    %71 = vrot.lane.b32.xlu0 %v63, 4
    %v72 = vpop.permute.xlu0 %71
    %73 = vrot.lane.b32.xlu0 %v64, 4
    %v74 = vpop.permute.xlu0 %73
    %75 = vrot.lane.b32.xlu0 %v65, 4
    %v76 = vpop.permute.xlu0 %75
    %77 = vrot.lane.b32.xlu0 %v66, 4
    %v78 = vpop.permute.xlu0 %77
    %79 = vrot.lane.b32.xlu0 %v67, 4
    %v80 = vpop.permute.xlu0 %79
    %81 = vrot.lane.b32.xlu0 %v68, 4
    %v82 = vpop.permute.xlu0 %81
    %v83 = vrot.slane %v72, 7
    %v84 = vrot.slane %v74, 7
    %v85 = vrot.slane %v76, 7
    %v86 = vrot.slane %v78, 7
    %v87 = vrot.slane %v80, 7
    %v88 = vrot.slane %v82, 7
    %v89 = vlaneseq
    %v90 = vshrl.u32 %v89, 7
    %vm91 = vcmp.lt.s32.totalorder %v90, 1
    %v92 = vsel %vm91, %v87, %v88
    %v93 = vsel %vm91, %v86, %v87
    %v94 = vsel %vm91, %v85, %v86
    %v95 = vsel %vm91, %v84, %v85
    %v96 = vsel %vm91, %v83, %v84
    %v97 = vsel %vm91, %v88, %v83
    %v98 = vlaneseq
    %v99 = vshrl.u32 %v98, 7
    %v100 = vsub.s32 0, %v99
    %v101 = vrot.slane %v69, %v100
    %v102 = vmul.f32 %v97, %v101
    %v103 = vmul.f32 %v96, %v101
    %v104 = vmul.f32 %v95, %v101
    %v105 = vmul.f32 %v94, %v101
    %v106 = vmul.f32 %v93, %v101
    %v107 = vmul.f32 %v92, %v101
    %v108 = vadd.f32 %v102, 0.0
    %v109 = vadd.f32 %v103, 0.0
    %v110 = vadd.f32 %v104, 0.0
    %v111 = vadd.f32 %v105, 0.0
    %v112 = vadd.f32 %v106, 0.0
    %v113 = vadd.f32 %v107, 0.0
    %v114 = vrot.slane %v63, 7
    %v115 = vrot.slane %v64, 7
    %v116 = vrot.slane %v65, 7
    %v117 = vrot.slane %v66, 7
    %v118 = vrot.slane %v67, 7
    %v119 = vrot.slane %v68, 7
    %v120 = vsel %vm91, %v118, %v119
    %v121 = vsel %vm91, %v117, %v118
    %v122 = vsel %vm91, %v116, %v117
    %v123 = vsel %vm91, %v115, %v116
    %v124 = vsel %vm91, %v114, %v115
    %v125 = vsel %vm91, %v119, %v114
    %v126 = vlaneseq
    %v127 = vshrl.u32 %v126, 7
    %v128 = vsub.s32 1, %v127
    %v129 = vrot.slane %v69, %v128
    %v130 = vmul.f32 %v125, %v129
    %v131 = vmul.f32 %v124, %v129
    %v132 = vmul.f32 %v123, %v129
    %v133 = vmul.f32 %v122, %v129
    %v134 = vmul.f32 %v121, %v129
    %v135 = vmul.f32 %v120, %v129
    %v136 = vadd.f32 %v108, %v130
    %v137 = vadd.f32 %v109, %v131
    %v138 = vadd.f32 %v110, %v132
    %v139 = vadd.f32 %v111, %v133
    %v140 = vadd.f32 %v112, %v134
    %v141 = vadd.f32 %v113, %v135
    %142 = vrot.lane.b32.xlu0 %v63, 124
    %v143 = vpop.permute.xlu0 %142
    %144 = vrot.lane.b32.xlu0 %v64, 124
    %v145 = vpop.permute.xlu0 %144
    %146 = vrot.lane.b32.xlu0 %v65, 124
    %v147 = vpop.permute.xlu0 %146
    %148 = vrot.lane.b32.xlu0 %v66, 124
    %v149 = vpop.permute.xlu0 %148
    %150 = vrot.lane.b32.xlu0 %v67, 124
    %v151 = vpop.permute.xlu0 %150
    %152 = vrot.lane.b32.xlu0 %v68, 124
    %v153 = vpop.permute.xlu0 %152
    %v154 = vrot.slane %v143, 7
    %v155 = vrot.slane %v145, 7
    %v156 = vrot.slane %v147, 7
    %v157 = vrot.slane %v149, 7
    %v158 = vrot.slane %v151, 7
    %v159 = vrot.slane %v153, 7
    %v160 = vsel %vm91, %v158, %v159
    %v161 = vsel %vm91, %v157, %v158
    %v162 = vsel %vm91, %v156, %v157
    %v163 = vsel %vm91, %v155, %v156
    %v164 = vsel %vm91, %v154, %v155
    %v165 = vsel %vm91, %v159, %v154
    %v166 = vlaneseq
    %v167 = vshrl.u32 %v166, 7
    %v168 = vsub.s32 2, %v167
    %v169 = vrot.slane %v69, %v168
    %v170 = vmul.f32 %v165, %v169
    %v171 = vmul.f32 %v164, %v169
    %v172 = vmul.f32 %v163, %v169
    %v173 = vmul.f32 %v162, %v169
    %v174 = vmul.f32 %v161, %v169
    %v175 = vmul.f32 %v160, %v169
    %v176 = vadd.f32 %v136, %v170
    %v177 = vadd.f32 %v137, %v171
    %v178 = vadd.f32 %v138, %v172
    %v179 = vadd.f32 %v139, %v173
    %v180 = vadd.f32 %v140, %v174
    %v181 = vadd.f32 %v141, %v175
    %v182 = vlaneseq
    %v183 = vshrl.u32 %v182, 7
    %v184 = vsub.s32 3, %v183
    %v185 = vrot.slane %v69, %v184
    %v186 = vmul.f32 %v72, %v185
    %v187 = vmul.f32 %v74, %v185
    %v188 = vmul.f32 %v76, %v185
    %v189 = vmul.f32 %v78, %v185
    %v190 = vmul.f32 %v80, %v185
    %v191 = vmul.f32 %v82, %v185
    %v192 = vadd.f32 %v176, %v186
    %v193 = vadd.f32 %v177, %v187
    %v194 = vadd.f32 %v178, %v188
    %v195 = vadd.f32 %v179, %v189
    %v196 = vadd.f32 %v180, %v190
    %v197 = vadd.f32 %v181, %v191
    %v198 = vlaneseq
    %v199 = vshrl.u32 %v198, 7
    %v200 = vsub.s32 4, %v199
    %v201 = vrot.slane %v69, %v200
    %v202 = vmul.f32 %v63, %v201
    %v203 = vmul.f32 %v64, %v201
    %v204 = vmul.f32 %v65, %v201
    %v205 = vmul.f32 %v66, %v201
    %v206 = vmul.f32 %v67, %v201
    %v207 = vmul.f32 %v68, %v201
    %v208 = vadd.f32 %v192, %v202
    %v209 = vadd.f32 %v193, %v203
    %v210 = vadd.f32 %v194, %v204
    %v211 = vadd.f32 %v195, %v205
    %v212 = vadd.f32 %v196, %v206
    %v213 = vadd.f32 %v197, %v207
    %v214 = vlaneseq
    %v215 = vshrl.u32 %v214, 7
    %v216 = vsub.s32 5, %v215
    %v217 = vrot.slane %v69, %v216
    %v218 = vmul.f32 %v143, %v217
    %v219 = vmul.f32 %v145, %v217
    %v220 = vmul.f32 %v147, %v217
    %v221 = vmul.f32 %v149, %v217
    %v222 = vmul.f32 %v151, %v217
    %v223 = vmul.f32 %v153, %v217
    %v224 = vadd.f32 %v208, %v218
    %v225 = vadd.f32 %v209, %v219
    %v226 = vadd.f32 %v210, %v220
    %v227 = vadd.f32 %v211, %v221
    %v228 = vadd.f32 %v212, %v222
    %v229 = vadd.f32 %v213, %v223
    %v230 = vrot.slane %v72, 1
    %v231 = vrot.slane %v74, 1
    %v232 = vrot.slane %v76, 1
    %v233 = vrot.slane %v78, 1
    %v234 = vrot.slane %v80, 1
    %v235 = vrot.slane %v82, 1
    %vm236 = vcmp.lt.s32.totalorder %v90, 7
    %v237 = vsel %vm236, %v234, %v235
    %v238 = vsel %vm236, %v233, %v234
    %v239 = vsel %vm236, %v232, %v233
    %v240 = vsel %vm236, %v231, %v232
    %v241 = vsel %vm236, %v230, %v231
    %v242 = vsel %vm236, %v235, %v230
    %v243 = vlaneseq
    %v244 = vshrl.u32 %v243, 7
    %v245 = vsub.s32 6, %v244
    %v246 = vrot.slane %v69, %v245
    %v247 = vmul.f32 %v241, %v246
    %v248 = vmul.f32 %v240, %v246
    %v249 = vmul.f32 %v239, %v246
    %v250 = vmul.f32 %v238, %v246
    %v251 = vmul.f32 %v237, %v246
    %v252 = vmul.f32 %v242, %v246
    %v253 = vadd.f32 %v224, %v247
    %v254 = vadd.f32 %v225, %v248
    %v255 = vadd.f32 %v226, %v249
    %v256 = vadd.f32 %v227, %v250
    %v257 = vadd.f32 %v228, %v251
    %v258 = vadd.f32 %v229, %v252
    %v259 = vrot.slane %v63, 1
    %v260 = vrot.slane %v64, 1
    %v261 = vrot.slane %v65, 1
    %v262 = vrot.slane %v66, 1
    %v263 = vrot.slane %v67, 1
    %v264 = vrot.slane %v68, 1
    %v265 = vsel %vm236, %v263, %v264
    %v266 = vsel %vm236, %v262, %v263
    %v267 = vsel %vm236, %v261, %v262
    %v268 = vsel %vm236, %v260, %v261
    %v269 = vsel %vm236, %v259, %v260
    %v270 = vsel %vm236, %v264, %v259
    %v271 = vlaneseq
    %v272 = vshrl.u32 %v271, 7
    %v273 = vsub.s32 7, %v272
    %v274 = vrot.slane %v69, %v273
    %v275 = vmul.f32 %v269, %v274
    %v276 = vmul.f32 %v268, %v274
    %v277 = vmul.f32 %v267, %v274
    %v278 = vmul.f32 %v266, %v274
    %v279 = vmul.f32 %v265, %v274
    %v280 = vmul.f32 %v270, %v274
    %v281 = vadd.f32 %v253, %v275
    %v282 = vadd.f32 %v254, %v276
    %v283 = vadd.f32 %v255, %v277
    %v284 = vadd.f32 %v256, %v278
    %v285 = vadd.f32 %v257, %v279
    %v286 = vadd.f32 %v258, %v280
    %v287 = vrot.slane %v143, 1
    %v288 = vrot.slane %v145, 1
    %v289 = vrot.slane %v147, 1
    %v290 = vrot.slane %v149, 1
    %v291 = vrot.slane %v151, 1
    %v292 = vrot.slane %v153, 1
    %v293 = vsel %vm236, %v291, %v292
    %v294 = vsel %vm236, %v290, %v291
    %v295 = vsel %vm236, %v289, %v290
    %v296 = vsel %vm236, %v288, %v289
    %v297 = vsel %vm236, %v287, %v288
    %v298 = vsel %vm236, %v292, %v287
    %v299 = vlaneseq
    %v300 = vshrl.u32 %v299, 7
    %v301 = vsub.s32 0, %v300
    %v302 = vrot.slane %v70, %v301
    %v303 = vmul.f32 %v297, %v302
    %v304 = vmul.f32 %v296, %v302
    %v305 = vmul.f32 %v295, %v302
    %v306 = vmul.f32 %v294, %v302
    %v307 = vmul.f32 %v293, %v302
    %v308 = vmul.f32 %v298, %v302
    %v309 = vadd.f32 %v281, %v303
    %v310 = vadd.f32 %v282, %v304
    %v311 = vadd.f32 %v283, %v305
    %v312 = vadd.f32 %v284, %v306
    %v313 = vadd.f32 %v285, %v307
    %v314 = vadd.f32 %v286, %v308
    %v315 = vld [vmem:[%s2] sm:$0x1]
    %v317 = vlaneseq
    %v318 = vshrl.u32 %v317, 7
    %v319 = vsub.s32 0, %v318
    %v320 = vrot.slane %v315, %v319
    %v322 = vadd.f32 %v309, %v320
    %v323 = vadd.f32 %v310, %v320
    %v324 = vadd.f32 %v311, %v320
    %v325 = vadd.f32 %v312, %v320
    %v326 = vadd.f32 %v313, %v320
    %v327 = vadd.f32 %v314, %v320
    %v328 = vmax.f32 %v322, 0.0
    %v329 = vmax.f32 %v323, 0.0
    %v330 = vmax.f32 %v324, 0.0
    %v331 = vmax.f32 %v325, 0.0
    %v332 = vmax.f32 %v326, 0.0
    %v333 = vmax.f32 %v327, 0.0
    %v334 = vmin.f32 %v328, 6.0
    %v335 = vmin.f32 %v329, 6.0
    %v336 = vmin.f32 %v330, 6.0
    %v337 = vmin.f32 %v331, 6.0
    %v338 = vmin.f32 %v332, 6.0
    %v339 = vmin.f32 %v333, 6.0
    %v340 = vpack.c.bf16 %v335, %v334
    %v341 = vpack.c.bf16 %v337, %v336
    %v342 = vpack.c.bf16 %v339, %v338
    %v343 = vld [vmem:[#allocation7] sm:$0xf]
    %v344 = vld [vmem:[#allocation7 + $0x4] sm:$0xf]
    %v345 = vld [vmem:[#allocation7 + $0x8] sm:$0xf]
    %v346 = vld [vmem:[#allocation7 + $0xc] sm:$0xf]
    %v347 = vld [vmem:[#allocation7 + $0x10] sm:$0xf]
    %v348 = vld [vmem:[#allocation7 + $0x14] sm:$0xf]
    %v349 = vld [vmem:[#allocation7 + $0x18] sm:$0xf]
    %v350 = vld [vmem:[#allocation7 + $0x1c] sm:$0xf]
    %v351 = vld [vmem:[#allocation7 + $0x20] sm:$0xf]
    %v352 = vld [vmem:[#allocation7 + $0x24] sm:$0xf]
    %v353 = vld [vmem:[#allocation7 + $0x28] sm:$0xf]
    %v354 = vld [vmem:[#allocation7 + $0x2c] sm:$0xf]
    %v355 = vld [vmem:[#allocation7 + $0x30] sm:$0xf]
    %v356 = vld [vmem:[#allocation7 + $0x34] sm:$0xf]
    %v357 = vld [vmem:[#allocation7 + $0x38] sm:$0xf]
    %v358 = vld [vmem:[#allocation7 + $0x3c] sm:$0xf]
    %v359 = vld [vmem:[%s4] sm:$0x1]
    %v361 = vlaneseq
    %v362 = vshrl.u32 %v361, 7
    %v363 = vsub.s32 0, %v362
    %v364 = vrot.slane %v359, %v363
    %v382 = vunpack.c.l.b16 %v343
    %v383 = vunpack.c.l.b16 %v344
    %v384 = vunpack.c.l.b16 %v345
    %v385 = vunpack.c.l.b16 %v346
    %v386 = vunpack.c.l.b16 %v347
    %v387 = vunpack.c.l.b16 %v348
    %v388 = vunpack.c.l.b16 %v349
    %v389 = vunpack.c.l.b16 %v350
    %v390 = vunpack.c.l.b16 %v351
    %v391 = vunpack.c.l.b16 %v352
    %v392 = vunpack.c.l.b16 %v353
    %v393 = vunpack.c.l.b16 %v354
    %v394 = vunpack.c.l.b16 %v355
    %v395 = vunpack.c.l.b16 %v356
    %v396 = vunpack.c.l.b16 %v357
    %v397 = vunpack.c.l.b16 %v358
    %v398 = vpack.c.b16 %v383, %v382
    %v399 = vpack.c.b16 %v385, %v384
    %v400 = vpack.c.b16 %v387, %v386
    %v401 = vpack.c.b16 %v389, %v388
    %v402 = vpack.c.b16 %v391, %v390
    %v403 = vpack.c.b16 %v393, %v392
    %v404 = vpack.c.b16 %v395, %v394
    %v405 = vpack.c.b16 %v397, %v396
    %414 = vmatprep.subr.bf16.mxu0 0
    %415 = vmatpush1.bf16.msra.mxu0 %v405
    %416 = vmatprep.subr.bf16.mxu0 0
    %417 = vmatpush1.bf16.msra.mxu0 %v404
    %418 = vmatprep.subr.bf16.mxu0 0
    %419 = vmatpush1.bf16.msra.mxu0 %v403
    %420 = vmatprep.subr.bf16.mxu0 0
    %421 = vmatpush1.bf16.msra.mxu0 %v402
    %422 = vmatprep.subr.bf16.mxu0 0
    %423 = vmatpush1.bf16.msra.mxu0 %v401
    %424 = vmatprep.subr.bf16.mxu0 0
    %425 = vmatpush1.bf16.msra.mxu0 %v400
    %426 = vmatprep.subr.bf16.mxu0 0
    %427 = vmatpush1.bf16.msra.mxu0 %v399
    %428 = vmatprep.subr.bf16.mxu0 0
    %429 = vmatpush1.bf16.msra.mxu0 %v398
    %430 = vmatprep.subr.bf16.mxu0 0
    %431 = vmatpush2.bf16.msra.mxu0 0
    %432 = vmatprep.subr.bf16.mxu0 0
    %433 = vmatpush2.bf16.msra.mxu0 0
    %434 = vmatprep.subr.bf16.mxu0 0
    %435 = vmatpush2.bf16.msra.mxu0 0
    %436 = vmatprep.subr.bf16.mxu0 0
    %437 = vmatpush2.bf16.msra.mxu0 0
    %438 = vmatprep.subr.bf16.mxu0 0
    %439 = vmatpush2.bf16.msra.mxu0 0
    %440 = vmatprep.subr.bf16.mxu0 0
    %441 = vmatpush2.bf16.msra.mxu0 0
    %442 = vmatprep.subr.bf16.mxu0 0
    %443 = vmatpush2.bf16.msra.mxu0 0
    %444 = vmatprep.subr.bf16.mxu0 0
    %445 = vmatpush2.bf16.msra.mxu0 0
    %446 = vmatprep.mubr.bf16.mxu0 0
    %447 = vmatmul.mubr.bf16.gmra.mxu0 %v340
    %v448 = vpop.f32.mrf.mxu0
    %v449 = vadd.f32 %v364, %v448
    %v450 = vpop.f32.mrf.mxu0
    %v451 = vpop.f32.mrf.mxu0
    %v452 = vadd.f32 %v364, %v451
    %v453 = vpop.f32.mrf.mxu0
    %454 = vmatprep.mubr.bf16.mxu0 0
    %455 = vmatmul.mubr.bf16.gmra.mxu0 %v341
    %v456 = vpop.f32.mrf.mxu0
    %v457 = vadd.f32 %v364, %v456
    %v458 = vpop.f32.mrf.mxu0
    %v459 = vpop.f32.mrf.mxu0
    %v460 = vadd.f32 %v364, %v459
    %v461 = vpop.f32.mrf.mxu0
    %462 = vmatprep.mubr.bf16.mxu0 0
    %463 = vmatmul.mubr.bf16.gmra.mxu0 %v342
    %v464 = vpop.f32.mrf.mxu0
    %v465 = vadd.f32 %v364, %v464
    %v466 = vpop.f32.mrf.mxu0
    %v467 = vpop.f32.mrf.mxu0
    %v468 = vadd.f32 %v364, %v467
    %v469 = vpop.f32.mrf.mxu0
    %470 = vdwg.mxu0
    %v471 = vmax.f32 %v449, 0.0
    %v472 = vmax.f32 %v452, 0.0
    %v473 = vmax.f32 %v457, 0.0
    %v474 = vmax.f32 %v460, 0.0
    %v475 = vmax.f32 %v465, 0.0
    %v476 = vmax.f32 %v468, 0.0
    %v477 = vmin.f32 %v471, 6.0
    %v478 = vmin.f32 %v472, 6.0
    %v479 = vmin.f32 %v473, 6.0
    %v480 = vmin.f32 %v474, 6.0
    %v481 = vmin.f32 %v475, 6.0
    %v482 = vmin.f32 %v476, 6.0
    %483 = vst [vmem:[#allocation8] sm:$0xff] %v477
    %484 = vst [vmem:[#allocation8 + $0x8] sm:$0xff] %v478
    %485 = vst [vmem:[#allocation8 + $0x10] sm:$0xff] %v479
    %486 = vst [vmem:[#allocation8 + $0x18] sm:$0xff] %v480
    %487 = vst [vmem:[#allocation8 + $0x20] sm:$0xff] %v481
    %488 = vst [vmem:[#allocation8 + $0x28] sm:$0xff] %v482
    // Predicated region
    $region34: #{dsconv_forward_packed.1} parent=1 // pred_check
      _
    $region35: #{dsconv_forward_packed.1} parent=1 // pred_check_branch
      %490 = sbr.rel (0) target = $region37
    $region36: #{dsconv_forward_packed.1} parent=1 // pred_region
      %s492 = ssub.s32 768, 768
      %493 = vsyncadd [#allocation4], %s492
      %s494 = sshll.u32 [#allocation8], 4
      %s495 = int_to_ptr.vmem [resolvable:$true] %s494
      %500 = dma.vmem_to_hbm [thread:$0]  %s495, 768, %s5, [#allocation4], 128, 128, 8
    $region37: #{dsconv_forward_packed.1} parent=1 // pred_fallthru
      _
    // Predicated region
    $region38: #{dsconv_forward_packed.1} parent=1 // pred_check
      _
    $region39: #{dsconv_forward_packed.1} parent=1 // pred_check_branch
      %502 = sbr.rel (0) target = $region41
    $region40: #{dsconv_forward_packed.1} parent=1 // pred_region
      %503 = dma.done [#allocation4], 768
    $region41: #{dsconv_forward_packed.1} parent=1 // pred_fallthru
      _
    %504 = vsyncpa [#allocation3], 1
    %505 = vsyncpa [#allocation6], 1
    %506 = vsyncpa [#allocation4], 1

</llo_original>
